<compile_context>
chip_gen: v6e
topology: v6e:2x2x1
jax: 0.10.0
libtpu: 0.0.40
codegen_flags: <defaults>
</compile_context>

<pallas_src>
import jax
import jax.numpy as jnp
from jax.experimental import pallas as pl
from jax.experimental.pallas import tpu as pltpu

_NEG_INF = -1e30  # same additive mask value as util.masked_softmax


def _pointer_kernel(m0_ref, m1_ref, m2_ref, mask_ref, w_ref,
                    logp1_ref, logp2_ref):
    m0 = m0_ref[...]          # [TB, L, D]
    m1 = m1_ref[...]          # [TB, L, D]
    m2 = m2_ref[...]          # [TB, L, D]
    mask = mask_ref[...]      # [TB, L]
    w = w_ref[...]            # [4, D]: w_start[:D], w_start[D:], w_end[:D], w_end[D:]

    ws0 = w[0:1, :]           # [1, D] -> broadcasts over [TB, L, D]
    ws1 = w[1:2, :]
    we0 = w[2:3, :]
    we2 = w[3:4, :]

    # Linear(2*D, 1, bias=False) on the concatenated features == sum over D of
    # the two weight-scaled halves.  VPU multiply + lane reduce yields
    # lane-dense [TB, L] logits.
    logit1 = jnp.sum(m0 * ws0 + m1 * ws1, axis=-1)     # [TB, L]
    logit2 = jnp.sum(m0 * we0 + m2 * we2, axis=-1)     # [TB, L]

    valid = mask > 0.0
    masked1 = jnp.where(valid, logit1, _NEG_INF)
    masked2 = jnp.where(valid, logit2, _NEG_INF)

    def log_softmax_lane(x):                           # over the L (lane) axis
        x_max = jnp.max(x, axis=-1, keepdims=True)
        shifted = x - x_max
        lse = jnp.log(jnp.sum(jnp.exp(shifted), axis=-1, keepdims=True))
        return shifted - lse

    logp1_ref[...] = log_softmax_lane(masked1)
    logp2_ref[...] = log_softmax_lane(masked2)


def _pick_batch_tile(B, L, D, budget_bytes):
    """Largest batch tile whose double-buffered f32 footprint fits the budget."""
    # Per batch row, per pipeline step: 3 inputs [L, D], mask [L], 2 outputs
    # [L], each double-buffered by the Pallas pipeline (f32 = 4 bytes).
    per_batch = 2 * 4 * (3 * L * D + 3 * L)
    tb = max(1, int(budget_bytes) // per_batch)
    if tb >= B:
        return B
    # (TB, L) blocks of the 2-D mask/output arrays need TB % 8 == 0 (sublane
    # tiling) unless TB covers the whole batch.  The max(8, ...) clamp can only
    # exceed the budget for extremely large L*D per batch row.
    tb = max(8, (tb // 8) * 8)
    return min(tb, B)


def pointer_forward(m0, m1, m2, mask, w_start, w_end, *,
                    vmem_budget_bytes=24 << 20):
    """Pallas implementation of Pointer.forward.

    Returns (log_p1, log_p2), each of shape [B, L] (the PyTorch `.squeeze()`
    result for B > 1, L > 1).
    """
    B, L, D = m0.shape
    assert w_start.shape == (2 * D,) and w_end.shape == (2 * D,)

    # Pack the four weight halves as rows of a single [4, D] matrix.
    w = jnp.stack([w_start[:D], w_start[D:], w_end[:D], w_end[D:]],
                  axis=0).astype(jnp.float32)
    mask2 = mask.astype(jnp.float32).reshape(B, L)

    tb = _pick_batch_tile(B, L, D, vmem_budget_bytes)
    grid = (pl.cdiv(B, tb),)

    m_spec = pl.BlockSpec((tb, L, D), lambda b: (b, 0, 0))
    v_spec = pl.BlockSpec((tb, L), lambda b: (b, 0))
    w_spec = pl.BlockSpec((4, D), lambda b: (0, 0))

    logp1, logp2 = pl.pallas_call(
        _pointer_kernel,
        out_shape=(jax.ShapeDtypeStruct((B, L), jnp.float32),
                   jax.ShapeDtypeStruct((B, L), jnp.float32)),
        grid_spec=pltpu.PrefetchScalarGridSpec(
            num_scalar_prefetch=0,
            grid=grid,
            in_specs=[m_spec, m_spec, m_spec, v_spec, w_spec],
            out_specs=[v_spec, v_spec],
        ),
        compiler_params=pltpu.CompilerParams(
            dimension_semantics=("parallel",)),
    )(m0, m1, m2, mask2, w)

    return logp1, logp2


def pointer_reference(m0, m1, m2, mask, w_start, w_end):
    """Pure-JAX reference mirroring the PyTorch forward (util.masked_softmax)."""
    x1 = jnp.concatenate([m0, m1], axis=-1)
    x2 = jnp.concatenate([m0, m2], axis=-1)
    l1 = jnp.einsum("bld,d->bl", x1, w_start)
    l2 = jnp.einsum("bld,d->bl", x2, w_end)
    mask_f = mask.astype(jnp.float32)
    ml1 = mask_f * l1 + (1.0 - mask_f) * _NEG_INF
    ml2 = mask_f * l2 + (1.0 - mask_f) * _NEG_INF
    return (jax.nn.log_softmax(ml1, axis=-1),
            jax.nn.log_softmax(ml2, axis=-1))


if __name__ == "__main__":
    B, L, model_dim = 2, 16, 32

    key = jax.random.PRNGKey(0)
    k0, k1, k2, kw1, kw2 = jax.random.split(key, 5)
    m0 = jax.random.normal(k0, (B, L, model_dim), jnp.float32)
    m1 = jax.random.normal(k1, (B, L, model_dim), jnp.float32)
    m2 = jax.random.normal(k2, (B, L, model_dim), jnp.float32)

    # mask: 1 for valid tokens, 0 for padding (second example has 5 padded slots).
    lengths = jnp.array([L, L - 5])
    mask = (jnp.arange(L)[None, :] < lengths[:, None]).astype(jnp.float32)

    # Deterministic init of the two bias-free Linear(model_dim*2, 1) weights.
    bound = 1.0 / float(jnp.sqrt(2.0 * model_dim))
    w_start = jax.random.uniform(kw1, (2 * model_dim,), jnp.float32, -bound, bound)
    w_end = jax.random.uniform(kw2, (2 * model_dim,), jnp.float32, -bound, bound)

    log_p1, log_p2 = pointer_forward(m0, m1, m2, mask, w_start, w_end)
    jax.block_until_ready((log_p1, log_p2))

    r1, r2 = pointer_reference(m0, m1, m2, mask, w_start, w_end)
    assert jnp.allclose(log_p1, r1, atol=1e-4, rtol=1e-4), "log_p1 mismatch"
    assert jnp.allclose(log_p2, r2, atol=1e-4, rtol=1e-4), "log_p2 mismatch"

    print("KERNEL_OK")
</pallas_src>

<mosaic_0001>
module attributes {stable_mosaic.version = 11 : i64} {
  func.func @_pointer_kernel(%arg0: i32, %arg1: memref<2x16x32xf32, #tpu.memory_space<vmem>>, %arg2: memref<2x16x32xf32, #tpu.memory_space<vmem>>, %arg3: memref<2x16x32xf32, #tpu.memory_space<vmem>>, %arg4: memref<2x16xf32, #tpu.memory_space<vmem>>, %arg5: memref<4x32xf32, #tpu.memory_space<vmem>>, %arg6: memref<2x16xf32, #tpu.memory_space<vmem>>, %arg7: memref<2x16xf32, #tpu.memory_space<vmem>>) attributes {dimension_semantics = [#tpu.dimension_semantics<parallel>], iteration_bounds = array<i64: 1>, scalar_prefetch = 0 : i64, scratch_operands = 0 : i64, tpu.core_type = #tpu.core_type<tc>, window_params = [{transform_indices = @transform_0, window_bounds = array<i64: 2, 16, 32>}, {transform_indices = @transform_1, window_bounds = array<i64: 2, 16, 32>}, {transform_indices = @transform_2, window_bounds = array<i64: 2, 16, 32>}, {transform_indices = @transform_3, window_bounds = array<i64: 2, 16>}, {pipeline_mode = #tpu.pipeline_mode<synchronous>, transform_indices = @transform_4, window_bounds = array<i64: 4, 32>}, {transform_indices = @transform_5, window_bounds = array<i64: 2, 16>}, {transform_indices = @transform_6, window_bounds = array<i64: 2, 16>}]} {
    %c0 = arith.constant 0 : index
    %c0_0 = arith.constant 0 : index
    %c0_1 = arith.constant 0 : index
    %0 = vector.load %arg1[%c0, %c0_0, %c0_1] : memref<2x16x32xf32, #tpu.memory_space<vmem>>, vector<2x16x32xf32>
    %c0_2 = arith.constant 0 : index
    %c0_3 = arith.constant 0 : index
    %c0_4 = arith.constant 0 : index
    %1 = vector.load %arg2[%c0_2, %c0_3, %c0_4] : memref<2x16x32xf32, #tpu.memory_space<vmem>>, vector<2x16x32xf32>
    %c0_5 = arith.constant 0 : index
    %c0_6 = arith.constant 0 : index
    %c0_7 = arith.constant 0 : index
    %2 = vector.load %arg3[%c0_5, %c0_6, %c0_7] : memref<2x16x32xf32, #tpu.memory_space<vmem>>, vector<2x16x32xf32>
    %c0_8 = arith.constant 0 : index
    %c0_9 = arith.constant 0 : index
    %3 = vector.load %arg4[%c0_8, %c0_9] : memref<2x16xf32, #tpu.memory_space<vmem>>, vector<2x16xf32>
    %c0_10 = arith.constant 0 : index
    %c0_11 = arith.constant 0 : index
    %4 = vector.load %arg5[%c0_10, %c0_11] : memref<4x32xf32, #tpu.memory_space<vmem>>, vector<4x32xf32>
    %5 = vector.extract_strided_slice %4 {offsets = [0, 0], sizes = [1, 32], strides = [1, 1]} : vector<4x32xf32> to vector<1x32xf32>
    %6 = vector.extract_strided_slice %4 {offsets = [1, 0], sizes = [1, 32], strides = [1, 1]} : vector<4x32xf32> to vector<1x32xf32>
    %7 = vector.extract_strided_slice %4 {offsets = [2, 0], sizes = [1, 32], strides = [1, 1]} : vector<4x32xf32> to vector<1x32xf32>
    %8 = vector.extract_strided_slice %4 {offsets = [3, 0], sizes = [1, 32], strides = [1, 1]} : vector<4x32xf32> to vector<1x32xf32>
    %9 = vector.shape_cast %5 : vector<1x32xf32> to vector<1x1x32xf32>
    %10 = vector.broadcast %9 : vector<1x1x32xf32> to vector<2x16x32xf32>
    %11 = arith.mulf %0, %10 : vector<2x16x32xf32>
    %12 = vector.shape_cast %6 : vector<1x32xf32> to vector<1x1x32xf32>
    %13 = vector.broadcast %12 : vector<1x1x32xf32> to vector<2x16x32xf32>
    %14 = arith.mulf %1, %13 : vector<2x16x32xf32>
    %15 = arith.addf %11, %14 : vector<2x16x32xf32>
    %cst = arith.constant dense<0.000000e+00> : vector<2x16xf32>
    %16 = vector.multi_reduction <add>, %15, %cst [2] : vector<2x16x32xf32> to vector<2x16xf32>
    %17 = vector.shape_cast %7 : vector<1x32xf32> to vector<1x1x32xf32>
    %18 = vector.broadcast %17 : vector<1x1x32xf32> to vector<2x16x32xf32>
    %19 = arith.mulf %0, %18 : vector<2x16x32xf32>
    %20 = vector.shape_cast %8 : vector<1x32xf32> to vector<1x1x32xf32>
    %21 = vector.broadcast %20 : vector<1x1x32xf32> to vector<2x16x32xf32>
    %22 = arith.mulf %2, %21 : vector<2x16x32xf32>
    %23 = arith.addf %19, %22 : vector<2x16x32xf32>
    %cst_12 = arith.constant dense<0.000000e+00> : vector<2x16xf32>
    %24 = vector.multi_reduction <add>, %23, %cst_12 [2] : vector<2x16x32xf32> to vector<2x16xf32>
    %cst_13 = arith.constant 0.000000e+00 : f32
    %25 = vector.broadcast %cst_13 : f32 to vector<2x16xf32>
    %26 = arith.cmpf ogt, %3, %25 : vector<2x16xf32>
    %cst_14 = arith.constant -1.000000e+30 : f32
    %27 = vector.broadcast %cst_14 : f32 to vector<2x16xf32>
    %28 = arith.select %26, %16, %27 : vector<2x16xi1>, vector<2x16xf32>
    %cst_15 = arith.constant -1.000000e+30 : f32
    %29 = vector.broadcast %cst_15 : f32 to vector<2x16xf32>
    %30 = arith.select %26, %24, %29 : vector<2x16xi1>, vector<2x16xf32>
    %cst_16 = arith.constant dense<0xFF800000> : vector<2xf32>
    %31 = vector.multi_reduction <maximumf>, %28, %cst_16 [1] : vector<2x16xf32> to vector<2xf32>
    %32 = vector.shape_cast %31 : vector<2xf32> to vector<2x1xf32>
    %33 = vector.broadcast %32 : vector<2x1xf32> to vector<2x16xf32>
    %34 = arith.subf %28, %33 : vector<2x16xf32>
    %35 = math.exp %34 : vector<2x16xf32>
    %cst_17 = arith.constant dense<0.000000e+00> : vector<2xf32>
    %36 = vector.multi_reduction <add>, %35, %cst_17 [1] : vector<2x16xf32> to vector<2xf32>
    %37 = vector.shape_cast %36 : vector<2xf32> to vector<2x1xf32>
    %38 = math.log %37 : vector<2x1xf32>
    %39 = vector.broadcast %38 : vector<2x1xf32> to vector<2x16xf32>
    %40 = arith.subf %34, %39 : vector<2x16xf32>
    %c0_18 = arith.constant 0 : index
    %c0_19 = arith.constant 0 : index
    %41 = vector.load %arg6[%c0_18, %c0_19] : memref<2x16xf32, #tpu.memory_space<vmem>>, vector<2x16xf32>
    tpu.vector_store %arg6[%c0_18, %c0_19], %40 {strides = array<i32>} : memref<2x16xf32, #tpu.memory_space<vmem>>, vector<2x16xf32>,
    %cst_20 = arith.constant dense<0xFF800000> : vector<2xf32>
    %42 = vector.multi_reduction <maximumf>, %30, %cst_20 [1] : vector<2x16xf32> to vector<2xf32>
    %43 = vector.shape_cast %42 : vector<2xf32> to vector<2x1xf32>
    %44 = vector.broadcast %43 : vector<2x1xf32> to vector<2x16xf32>
    %45 = arith.subf %30, %44 : vector<2x16xf32>
    %46 = math.exp %45 : vector<2x16xf32>
    %cst_21 = arith.constant dense<0.000000e+00> : vector<2xf32>
    %47 = vector.multi_reduction <add>, %46, %cst_21 [1] : vector<2x16xf32> to vector<2xf32>
    %48 = vector.shape_cast %47 : vector<2xf32> to vector<2x1xf32>
    %49 = math.log %48 : vector<2x1xf32>
    %50 = vector.broadcast %49 : vector<2x1xf32> to vector<2x16xf32>
    %51 = arith.subf %45, %50 : vector<2x16xf32>
    %c0_22 = arith.constant 0 : index
    %c0_23 = arith.constant 0 : index
    %52 = vector.load %arg7[%c0_22, %c0_23] : memref<2x16xf32, #tpu.memory_space<vmem>>, vector<2x16xf32>
    tpu.vector_store %arg7[%c0_22, %c0_23], %51 {strides = array<i32>} : memref<2x16xf32, #tpu.memory_space<vmem>>, vector<2x16xf32>,
    return
  }
  func.func @transform_0(%arg0: i32) -> (i32, i32, i32) {
    %c0_i32 = arith.constant 0 : i32
    %c0_i32_0 = arith.constant 0 : i32
    %c0_i32_1 = arith.constant 0 : i32
    return %arg0, %c0_i32, %c0_i32_0 : i32, i32, i32
  }
  func.func @transform_1(%arg0: i32) -> (i32, i32, i32) {
    %c0_i32 = arith.constant 0 : i32
    %c0_i32_0 = arith.constant 0 : i32
    %c0_i32_1 = arith.constant 0 : i32
    return %arg0, %c0_i32, %c0_i32_0 : i32, i32, i32
  }
  func.func @transform_2(%arg0: i32) -> (i32, i32, i32) {
    %c0_i32 = arith.constant 0 : i32
    %c0_i32_0 = arith.constant 0 : i32
    %c0_i32_1 = arith.constant 0 : i32
    return %arg0, %c0_i32, %c0_i32_0 : i32, i32, i32
  }
  func.func @transform_3(%arg0: i32) -> (i32, i32) {
    %c0_i32 = arith.constant 0 : i32
    %c0_i32_0 = arith.constant 0 : i32
    return %arg0, %c0_i32 : i32, i32
  }
  func.func @transform_4(%arg0: i32) -> (i32, i32) {
    %c0_i32 = arith.constant 0 : i32
    %c0_i32_0 = arith.constant 0 : i32
    %c0_i32_1 = arith.constant 0 : i32
    return %c0_i32, %c0_i32_0 : i32, i32
  }
  func.func @transform_5(%arg0: i32) -> (i32, i32) {
    %c0_i32 = arith.constant 0 : i32
    %c0_i32_0 = arith.constant 0 : i32
    return %arg0, %c0_i32 : i32, i32
  }
  func.func @transform_6(%arg0: i32) -> (i32, i32) {
    %c0_i32 = arith.constant 0 : i32
    %c0_i32_0 = arith.constant 0 : i32
    return %arg0, %c0_i32 : i32, i32
  }
}

</mosaic_0001>

<llo_original>
// kernel: tpu_custom_call.1
$region0: #{tpu_custom_call.1}
  #allocation0 [shape = 'u32[]', space=smem, size = 0x4, offset = 0x4, fixed_abs, tag = 'smem constant byte address 0x4 - core index']
  #allocation1 [shape = 'u32[144,128]{1,0:T(1,128)}', space=vmem, size = 0x12000, scoped, tag = 'internal scratch']
  %s0 = inlined_call_operand.hbm [shape: f32[2,16,32], index: 0, kind: input, shape index: {}]
  %s1 = inlined_call_operand.hbm [shape: f32[2,16,32], index: 1, kind: input, shape index: {}]
  %s2 = inlined_call_operand.hbm [shape: f32[2,16,32], index: 2, kind: input, shape index: {}]
  %s3 = inlined_call_operand.vmem [shape: f32[2,16], index: 3, kind: input, shape index: {}]
  %s4 = inlined_call_operand.vmem [shape: f32[4,32], index: 4, kind: input, shape index: {}]
  %s5 = inlined_call_operand.hbm [shape: f32[2,16], index: 5, kind: output, shape index: {0}]
  %s6 = inlined_call_operand.hbm [shape: f32[2,16], index: 6, kind: output, shape index: {1}]
  %7 = xla_tuple %s5, %s6
  %s8 = sld [smem:[#allocation0]]
  $region50: #{tpu_custom_call.1} parent=0
    _
  %s10 = ssub.s32 1, %s8
  %s11 = scalar_select 0, %s10, %s8
  $region1: #{tpu_custom_call.1} parent=0
    #allocation2 [shape = 'u8[16384]{0}', space=vmem, size = 0x4000, scoped, tag = 'input window, operand 0, single buffered']
    #allocation3 [shape = 's32[1]{0}', space=sflag, size = 0x4, scoped, tag = 'scoped memory for tpu_custom_call.1']
    #allocation4 [shape = 's32[1]{0}', space=sflag, size = 0x4, scoped, tag = 'scoped memory for tpu_custom_call.1']
    #allocation5 [shape = 'u8[16384]{0}', space=vmem, size = 0x4000, scoped, tag = 'input window, operand 1, single buffered']
    #allocation6 [shape = 's32[1]{0}', space=sflag, size = 0x4, scoped, tag = 'scoped memory for tpu_custom_call.1']
    #allocation7 [shape = 'u8[16384]{0}', space=vmem, size = 0x4000, scoped, tag = 'input window, operand 2, single buffered']
    #allocation8 [shape = 'u8[1024]{0}', space=vmem, size = 0x400, scoped, tag = 'output window, operand 0, single buffered']
    #allocation9 [shape = 'u8[1024]{0}', space=vmem, size = 0x400, scoped, tag = 'output window, operand 1, single buffered']
    #allocation10 [shape = 's32[1]{0}', space=sflag, size = 0x4, scoped, tag = 'scoped memory for tpu_custom_call.1']
    %12 = vsyncpa [#allocation3], 0
    %13 = vsyncpa [#allocation6], 0
    %14 = vsyncpa [#allocation4], 0
    %15 = vsyncpa [#allocation10], 0
    // Predicated region
    $region2: #{tpu_custom_call.1} parent=1 // pred_check
      _
    $region3: #{tpu_custom_call.1} parent=1 // pred_check_branch
      %17 = sbr.rel (0) target = $region5
    $region4: #{tpu_custom_call.1} parent=1 // pred_region
      %s19 = ssub.s32 512, 512
      %20 = vsyncadd [#allocation3], %s19
      %s21 = sshll.u32 [#allocation2], 4
      %s22 = int_to_ptr.vmem [resolvable:$true] %s21
      %27 = dma.hbm_to_vmem [thread:$0]  %s0, 512, %s22, [#allocation3], 128, 128, 8
    $region5: #{tpu_custom_call.1} parent=1 // pred_fallthru
      _
    // Predicated region
    $region6: #{tpu_custom_call.1} parent=1 // pred_check
      _
    $region7: #{tpu_custom_call.1} parent=1 // pred_check_branch
      %29 = sbr.rel (0) target = $region9
    $region8: #{tpu_custom_call.1} parent=1 // pred_region
      %s31 = ssub.s32 512, 512
      %32 = vsyncadd [#allocation6], %s31
      %s33 = sshll.u32 [#allocation5], 4
      %s34 = int_to_ptr.vmem [resolvable:$true] %s33
      %39 = dma.hbm_to_vmem [thread:$0]  %s1, 512, %s34, [#allocation6], 128, 128, 8
    $region9: #{tpu_custom_call.1} parent=1 // pred_fallthru
      _
    // Predicated region
    $region10: #{tpu_custom_call.1} parent=1 // pred_check
      _
    $region11: #{tpu_custom_call.1} parent=1 // pred_check_branch
      %41 = sbr.rel (0) target = $region13
    $region12: #{tpu_custom_call.1} parent=1 // pred_region
      %s43 = ssub.s32 512, 512
      %44 = vsyncadd [#allocation6], %s43
      %s45 = sshll.u32 [#allocation7], 4
      %s46 = int_to_ptr.vmem [resolvable:$true] %s45
      %51 = dma.hbm_to_vmem [thread:$0]  %s2, 512, %s46, [#allocation6], 128, 128, 8
    $region13: #{tpu_custom_call.1} parent=1 // pred_fallthru
      _
    // Predicated region
    $region14: #{tpu_custom_call.1} parent=1 // pred_check
      _
    $region15: #{tpu_custom_call.1} parent=1 // pred_check_branch
      %53 = sbr.rel (0) target = $region17
    $region16: #{tpu_custom_call.1} parent=1 // pred_region
      _
    $region17: #{tpu_custom_call.1} parent=1 // pred_fallthru
      _
    // Predicated region
    $region18: #{tpu_custom_call.1} parent=1 // pred_check
      _
    $region19: #{tpu_custom_call.1} parent=1 // pred_check_branch
      %55 = sbr.rel (0) target = $region21
    $region20: #{tpu_custom_call.1} parent=1 // pred_region
      _
    $region21: #{tpu_custom_call.1} parent=1 // pred_fallthru
      _
    // Predicated region
    $region22: #{tpu_custom_call.1} parent=1 // pred_check
      _
    $region23: #{tpu_custom_call.1} parent=1 // pred_check_branch
      %57 = sbr.rel (0) target = $region25
    $region24: #{tpu_custom_call.1} parent=1 // pred_region
      %58 = dma.done [#allocation3], 512
    $region25: #{tpu_custom_call.1} parent=1 // pred_fallthru
      _
    // Predicated region
    $region26: #{tpu_custom_call.1} parent=1 // pred_check
      _
    $region27: #{tpu_custom_call.1} parent=1 // pred_check_branch
      %60 = sbr.rel (0) target = $region29
    $region28: #{tpu_custom_call.1} parent=1 // pred_region
      %61 = dma.done [#allocation6], 512
    $region29: #{tpu_custom_call.1} parent=1 // pred_fallthru
      _
    // Predicated region
    $region30: #{tpu_custom_call.1} parent=1 // pred_check
      _
    $region31: #{tpu_custom_call.1} parent=1 // pred_check_branch
      %63 = sbr.rel (0) target = $region33
    $region32: #{tpu_custom_call.1} parent=1 // pred_region
      %64 = dma.done [#allocation6], 512
    $region33: #{tpu_custom_call.1} parent=1 // pred_fallthru
      _
    %v65 = vld [vmem:[#allocation2] sm:$0xff]
    %v66 = vld [vmem:[#allocation2 + $0x8] sm:$0xff]
    %v67 = vld [vmem:[#allocation2 + $0x10] sm:$0xff]
    %v68 = vld [vmem:[#allocation2 + $0x18] sm:$0xff]
    %v69 = vld [vmem:[#allocation5] sm:$0xff]
    %v70 = vld [vmem:[#allocation5 + $0x8] sm:$0xff]
    %v71 = vld [vmem:[#allocation5 + $0x10] sm:$0xff]
    %v72 = vld [vmem:[#allocation5 + $0x18] sm:$0xff]
    %v73 = vld [vmem:[#allocation7] sm:$0xff]
    %v74 = vld [vmem:[#allocation7 + $0x8] sm:$0xff]
    %v75 = vld [vmem:[#allocation7 + $0x10] sm:$0xff]
    %v76 = vld [vmem:[#allocation7 + $0x18] sm:$0xff]
    %v77 = vld [vmem:[%s3] sm:$0x3]
    %v78 = vld [vmem:[%s4] sm:$0xf]
    %v79 = vlaneseq
    %v80 = vshrl.u32 %v79, 7
    %v81 = vsub.s32 0, %v80
    %v82 = vrot.slane %v78, %v81
    %v83 = vmul.f32 %v65, %v82
    %v84 = vmul.f32 %v66, %v82
    %v85 = vmul.f32 %v67, %v82
    %v86 = vmul.f32 %v68, %v82
    %v87 = vlaneseq
    %v88 = vshrl.u32 %v87, 7
    %v89 = vsub.s32 1, %v88
    %v90 = vrot.slane %v78, %v89
    %v91 = vmul.f32 %v69, %v90
    %v92 = vmul.f32 %v70, %v90
    %v93 = vmul.f32 %v71, %v90
    %v94 = vmul.f32 %v72, %v90
    %v95 = vadd.f32 %v83, %v91
    %v96 = vadd.f32 %v84, %v92
    %v97 = vadd.f32 %v85, %v93
    %v98 = vadd.f32 %v86, %v94
    %vm99 = vcmask 261120
    %v100 = vsel %vm99, %v95, 0.0
    %101 = vadd.xlane.f32.xlu0 %v100
    %v102 = vpop.xlane.xlu0 %101
    %v103 = vsel %vm99, %v96, 0.0
    %104 = vadd.xlane.f32.xlu0 %v103
    %v105 = vpop.xlane.xlu0 %104
    %v106 = vsel %vm99, %v97, 0.0
    %107 = vadd.xlane.f32.xlu0 %v106
    %v108 = vpop.xlane.xlu0 %107
    %v109 = vsel %vm99, %v98, 0.0
    %110 = vadd.xlane.f32.xlu0 %v109
    %v111 = vpop.xlane.xlu0 %110
    %v112 = vlaneseq
    %v113 = vshrl.u32 %v112, 7
    %v114 = vsub.s32 2, %v113
    %v115 = vrot.slane %v78, %v114
    %v116 = vmul.f32 %v65, %v115
    %v117 = vmul.f32 %v66, %v115
    %v118 = vmul.f32 %v67, %v115
    %v119 = vmul.f32 %v68, %v115
    %v120 = vlaneseq
    %v121 = vshrl.u32 %v120, 7
    %v122 = vsub.s32 3, %v121
    %v123 = vrot.slane %v78, %v122
    %v124 = vmul.f32 %v73, %v123
    %v125 = vmul.f32 %v74, %v123
    %v126 = vmul.f32 %v75, %v123
    %v127 = vmul.f32 %v76, %v123
    %v128 = vadd.f32 %v116, %v124
    %v129 = vadd.f32 %v117, %v125
    %v130 = vadd.f32 %v118, %v126
    %v131 = vadd.f32 %v119, %v127
    %v132 = vsel %vm99, %v128, 0.0
    %133 = vadd.xlane.f32.xlu0 %v132
    %v134 = vpop.xlane.xlu0 %133
    %v135 = vsel %vm99, %v129, 0.0
    %136 = vadd.xlane.f32.xlu0 %v135
    %v137 = vpop.xlane.xlu0 %136
    %v138 = vsel %vm99, %v130, 0.0
    %139 = vadd.xlane.f32.xlu0 %v138
    %v140 = vpop.xlane.xlu0 %139
    %v141 = vsel %vm99, %v131, 0.0
    %142 = vadd.xlane.f32.xlu0 %v141
    %v143 = vpop.xlane.xlu0 %142
    %vm144 = vcmp.gt.f32.partialorder %v77, 0.0
    %v149 = vlaneseq
    %v150 = vand.u32 %v149, 127
    %v151 = vlaneseq
    %v152 = vshrl.u32 %v151, 7
    %v153 = vsub.s32 %v150, %v152
    %v154 = vrot.slane %v102, %v153
    %v155 = vadd.s32 %v150, 4294967288
    %v156 = vlaneseq
    %v157 = vshrl.u32 %v156, 7
    %v158 = vsub.s32 %v155, %v157
    %v159 = vrot.slane %v105, %v158
    %vm160 = vcmask 130112
    %v161 = vsel %vm160, %v159, %v154
    %v162 = vlaneseq
    %v163 = vshrl.u32 %v162, 7
    %v164 = vsub.s32 %v150, %v163
    %v165 = vrot.slane %v108, %v164
    %v166 = vlaneseq
    %v167 = vshrl.u32 %v166, 7
    %v168 = vsub.s32 %v155, %v167
    %v169 = vrot.slane %v111, %v168
    %v170 = vsel %vm160, %v169, %v165
    %vm171 = vcmask 1041409
    %v172 = vsel %vm171, %v170, %v161
    %v174 = vsel %vm144, %v172, -1e+30
    %v179 = vlaneseq
    %v180 = vshrl.u32 %v179, 7
    %v181 = vsub.s32 %v150, %v180
    %v182 = vrot.slane %v134, %v181
    %v183 = vlaneseq
    %v184 = vshrl.u32 %v183, 7
    %v185 = vsub.s32 %v155, %v184
    %v186 = vrot.slane %v137, %v185
    %v187 = vsel %vm160, %v186, %v182
    %v188 = vlaneseq
    %v189 = vshrl.u32 %v188, 7
    %v190 = vsub.s32 %v150, %v189
    %v191 = vrot.slane %v140, %v190
    %v192 = vlaneseq
    %v193 = vshrl.u32 %v192, 7
    %v194 = vsub.s32 %v155, %v193
    %v195 = vrot.slane %v143, %v194
    %v196 = vsel %vm160, %v195, %v191
    %v197 = vsel %vm171, %v196, %v187
    %v199 = vsel %vm144, %v197, -1e+30
    %vm200 = vcmask 123904
    %v201 = vsel %vm200, %v174, -inf
    %202 = vmax.xlane.f32.xlu0 %v201
    %v203 = vpop.xlane.xlu0 %202
    %v204 = vsub.f32 %v174, %v203
    %v205 = vmul.f32 %v204, 1.442695
    %v206 = vpow.pop %v205
    %v207 = vsel %vm200, %v206, 0.0
    %208 = vadd.xlane.f32.xlu0 %v207
    %v209 = vpop.xlane.xlu0 %208
    %v210 = vlog2.pop %v209
    %v211 = vmul.f32 %v210, 0.6931472
    %v212 = vsub.f32 %v204, %v211
    %213 = vst.msk [vmem:[#allocation8] sm:$0x3] %vm200, %v212
    %v214 = vsel %vm200, %v199, -inf
    %215 = vmax.xlane.f32.xlu0 %v214
    %v216 = vpop.xlane.xlu0 %215
    %v217 = vsub.f32 %v199, %v216
    %v218 = vmul.f32 %v217, 1.442695
    %v219 = vpow.pop %v218
    %v220 = vsel %vm200, %v219, 0.0
    %221 = vadd.xlane.f32.xlu0 %v220
    %v222 = vpop.xlane.xlu0 %221
    %v223 = vlog2.pop %v222
    %v224 = vmul.f32 %v223, 0.6931472
    %v225 = vsub.f32 %v217, %v224
    %226 = vst.msk [vmem:[#allocation9] sm:$0x3] %vm200, %v225
    // Predicated region
    $region34: #{tpu_custom_call.1} parent=1 // pred_check
      _
    $region35: #{tpu_custom_call.1} parent=1 // pred_check_branch
      %228 = sbr.rel (0) target = $region37
    $region36: #{tpu_custom_call.1} parent=1 // pred_region
      %s230 = ssub.s32 32, 32
      %231 = vsyncadd [#allocation4], %s230
      %s233 = sshll.u32 [#allocation8], 4
      %s234 = int_to_ptr.vmem [resolvable:$true] %s233
      %236 = dma.vmem_to_hbm [thread:$0]  %s234, 32, %s5, [#allocation4]
    $region37: #{tpu_custom_call.1} parent=1 // pred_fallthru
      _
    // Predicated region
    $region38: #{tpu_custom_call.1} parent=1 // pred_check
      _
    $region39: #{tpu_custom_call.1} parent=1 // pred_check_branch
      %238 = sbr.rel (0) target = $region41
    $region40: #{tpu_custom_call.1} parent=1 // pred_region
      %s240 = ssub.s32 32, 32
      %241 = vsyncadd [#allocation10], %s240
      %s243 = sshll.u32 [#allocation9], 4
      %s244 = int_to_ptr.vmem [resolvable:$true] %s243
      %246 = dma.vmem_to_hbm [thread:$0]  %s244, 32, %s6, [#allocation10]
    $region41: #{tpu_custom_call.1} parent=1 // pred_fallthru
      _
    // Predicated region
    $region42: #{tpu_custom_call.1} parent=1 // pred_check
      _
    $region43: #{tpu_custom_call.1} parent=1 // pred_check_branch
      %248 = sbr.rel (0) target = $region45
    $region44: #{tpu_custom_call.1} parent=1 // pred_region
      %249 = dma.done [#allocation4], 32
    $region45: #{tpu_custom_call.1} parent=1 // pred_fallthru
      _
    // Predicated region
    $region46: #{tpu_custom_call.1} parent=1 // pred_check
      _
    $region47: #{tpu_custom_call.1} parent=1 // pred_check_branch
      %251 = sbr.rel (0) target = $region49
    $region48: #{tpu_custom_call.1} parent=1 // pred_region
      %252 = dma.done [#allocation10], 32
    $region49: #{tpu_custom_call.1} parent=1 // pred_fallthru
      _
    %253 = vsyncpa [#allocation3], 1
    %254 = vsyncpa [#allocation6], 1
    %255 = vsyncpa [#allocation4], 1
    %256 = vsyncpa [#allocation10], 1

</llo_original>
